<compile_context>
chip_gen: v7x
topology: tpu7x:2x2x1
jax: 0.10.0
libtpu: 0.0.40
codegen_flags: <defaults>
</compile_context>

<pallas_src>
import functools
import math

import jax
import jax.numpy as jnp
from jax.experimental import pallas as pl
from jax.experimental.pallas import tpu as pltpu

_VMEM_LIMIT = 48 * 1024 * 1024  # fits v5e/v6e (128 MB phys) and v7x (64 MB phys)


def _round_up(x, m):
    return (x + m - 1) // m * m


def _gelu(y):
    # TODO(synk): HF BERT uses exact erf-GELU; tanh approximation used here (close, not bitwise).
    c = math.sqrt(2.0 / math.pi)
    return 0.5 * y * (1.0 + jnp.tanh(c * (y + 0.044715 * y * y * y)))


# ----------------------------------------------------------------------------
# Weight-resident dense:  y = act(x @ w + b)            (bf16 MXU, f32 epilogue)
# Optional fused epilogue: y = LayerNorm(x @ w + b + residual)
# Grid is (M/tm,) only; the full (K, N) weight is VMEM-resident (constant index_map).
# ----------------------------------------------------------------------------

def _dense_kernel(x_ref, w_ref, b_ref, o_ref, *, activation):
    y = jnp.dot(x_ref[...], w_ref[...], preferred_element_type=jnp.float32)
    y = y + b_ref[...]                                   # bias in f32
    if activation == "gelu":
        y = _gelu(y)
    o_ref[...] = y.astype(o_ref.dtype)


def _dense_add_ln_kernel(x_ref, w_ref, b_ref, r_ref, g_ref, bb_ref, o_ref, *, eps):
    y = jnp.dot(x_ref[...], w_ref[...], preferred_element_type=jnp.float32)
    y = y + b_ref[...] + r_ref[...].astype(jnp.float32)  # fused residual add (f32)
    mean = jnp.mean(y, axis=-1, keepdims=True)
    var = jnp.mean(jnp.square(y - mean), axis=-1, keepdims=True)
    inv = jax.lax.rsqrt(var + eps)
    o_ref[...] = ((y - mean) * inv * g_ref[...] + bb_ref[...]).astype(o_ref.dtype)


def dense(x, w, b, *, activation=None, residual=None, ln_gamma=None, ln_beta=None,
          ln_eps=1e-12, out_dtype=jnp.bfloat16, tm_target=512):
    """x:(M,K) @ w:(K,N) + b.  Optionally fuses GELU, or residual-add + LayerNorm."""
    M, K = x.shape
    N = w.shape[1]
    fuse_ln = ln_gamma is not None

    tm = M if M <= tm_target else tm_target
    Mp = _round_up(M, tm)                                # only M may pad; K/N never tiled/padded

    xb = x.astype(jnp.bfloat16)
    wb = w.astype(jnp.bfloat16)
    bf = b.astype(jnp.float32).reshape(1, N)
    if Mp != M:
        xb = jnp.pad(xb, ((0, Mp - M), (0, 0)))

    x_spec = pl.BlockSpec((tm, K), lambda i: (i, 0))
    w_spec = pl.BlockSpec((K, N), lambda i: (0, 0))      # constant index -> weight DMA'd once
    v_spec = pl.BlockSpec((1, N), lambda i: (0, 0))
    r_spec = pl.BlockSpec((tm, N), lambda i: (i, 0))
    o_spec = pl.BlockSpec((tm, N), lambda i: (i, 0))

    flops = 2 * M * N * K
    trans = M * N if activation == "gelu" else 0
    bytes_acc = Mp * K * 2 + K * N * 2 + N * 4 + Mp * N * jnp.dtype(out_dtype).itemsize

    if fuse_ln:
        rb = residual.astype(jnp.bfloat16)
        if Mp != M:
            rb = jnp.pad(rb, ((0, Mp - M), (0, 0)))
        g = ln_gamma.astype(jnp.float32).reshape(1, N)
        be = ln_beta.astype(jnp.float32).reshape(1, N)
        kernel = functools.partial(_dense_add_ln_kernel, eps=ln_eps)
        operands = (xb, wb, bf, rb, g, be)
        in_specs = [x_spec, w_spec, v_spec, r_spec, v_spec, v_spec]
        bytes_acc += Mp * N * 2 + 2 * N * 4
        trans += M                                       # one rsqrt per row
    else:
        kernel = functools.partial(_dense_kernel, activation=activation)
        operands = (xb, wb, bf)
        in_specs = [x_spec, w_spec, v_spec]

    out = pl.pallas_call(
        kernel,
        out_shape=jax.ShapeDtypeStruct((Mp, N), out_dtype),
        grid=(Mp // tm,),
        in_specs=in_specs,
        out_specs=o_spec,
        compiler_params=pltpu.CompilerParams(
            dimension_semantics=("parallel",),
            vmem_limit_bytes=_VMEM_LIMIT),
        cost_estimate=pl.CostEstimate(flops=int(flops), transcendentals=int(trans),
                                      bytes_accessed=int(bytes_acc)),
    )(*operands)
    return out[:M] if Mp != M else out


# ----------------------------------------------------------------------------
# Standalone LayerNorm (embedding LN only — everywhere else LN is fused into dense)
# ----------------------------------------------------------------------------

def _ln_kernel(x_ref, g_ref, b_ref, o_ref, *, eps):
    x = x_ref[...].astype(jnp.float32)
    mean = jnp.mean(x, axis=-1, keepdims=True)
    var = jnp.mean(jnp.square(x - mean), axis=-1, keepdims=True)
    inv = jax.lax.rsqrt(var + eps)
    o_ref[...] = ((x - mean) * inv * g_ref[...] + b_ref[...]).astype(o_ref.dtype)


def layernorm(x, gamma, beta, eps=1e-12, out_dtype=jnp.bfloat16, tm_target=512):
    M, H = x.shape
    tm = M if M <= tm_target else tm_target
    Mp = _round_up(M, tm)
    xp = jnp.pad(x, ((0, Mp - M), (0, 0))) if Mp != M else x
    g = gamma.astype(jnp.float32).reshape(1, H)
    b = beta.astype(jnp.float32).reshape(1, H)
    row_spec = pl.BlockSpec((tm, H), lambda i: (i, 0))
    vec_spec = pl.BlockSpec((1, H), lambda i: (0, 0))
    out = pl.pallas_call(
        functools.partial(_ln_kernel, eps=eps),
        out_shape=jax.ShapeDtypeStruct((Mp, H), out_dtype),
        grid=(Mp // tm,),
        in_specs=[row_spec, vec_spec, vec_spec],
        out_specs=row_spec,
        compiler_params=pltpu.CompilerParams(dimension_semantics=("parallel",),
                                             vmem_limit_bytes=_VMEM_LIMIT),
    )(xp, g, b)
    return out[:M] if Mp != M else out


# ----------------------------------------------------------------------------
# Attention.  qkv is the packed (B*S, 3H) projection [Q|K|V]; scale is already
# folded into the Q columns of the projection weights.  Softmax in f32, per-head
# context stored directly into its output columns (no concat, no head transposes).
# ----------------------------------------------------------------------------

def _attn_one_head(q, k, v, bias):
    s = jax.lax.dot_general(q, k, (((1,), (1,)), ((), ())),
                            preferred_element_type=jnp.float32)          # (S, S)
    s = s + bias                                                          # additive mask, f32
    m = jnp.max(s, axis=-1, keepdims=True)
    p = jnp.exp(s - m)
    denom = jnp.sum(p, axis=-1, keepdims=True)
    p = p * pl.reciprocal(denom, approx=True)                             # EUP, not a VPU divide
    return jnp.dot(p.astype(v.dtype), v, preferred_element_type=jnp.float32)


def _attn_kernel_grouped(q_ref, k_ref, v_ref, bias_ref, o_ref, *, heads, head_dim):
    bias = bias_ref[0]                                                    # (1, S)
    for h in range(heads):                                                # few heads per group
        sl = pl.ds(h * head_dim, head_dim)
        ctx = _attn_one_head(q_ref[:, sl], k_ref[:, sl], v_ref[:, sl], bias)
        o_ref[:, sl] = ctx.astype(o_ref.dtype)                            # per-head direct store


def _attn_kernel_packed(qkv_ref, bias_ref, o_ref, *, heads, head_dim, hidden):
    bias = bias_ref[0]                                                    # (1, S)
    for h in range(heads):
        q = qkv_ref[:, pl.ds(h * head_dim, head_dim)]
        k = qkv_ref[:, pl.ds(hidden + h * head_dim, head_dim)]
        v = qkv_ref[:, pl.ds(2 * hidden + h * head_dim, head_dim)]
        ctx = _attn_one_head(q, k, v, bias)
        o_ref[:, pl.ds(h * head_dim, head_dim)] = ctx.astype(o_ref.dtype)


def attention(qkv, mask_bias, *, batch, seq, num_heads, head_dim):
    """qkv: (B*S, 3H) packed [q|k|v] (q pre-scaled); mask_bias: (B, 1, S) f32 additive bias."""
    H = num_heads * head_dim
    flops = 4 * batch * num_heads * seq * seq * head_dim
    trans = batch * num_heads * seq * seq
    bytes_acc = int(qkv.size * qkv.dtype.itemsize + mask_bias.size * 4 + batch * seq * H * 2)
    ce = pl.CostEstimate(flops=int(flops), transcendentals=int(trans), bytes_accessed=bytes_acc)

    # Pick the smallest head group whose Q/K/V column slice is lane-dense (multiple of 128):
    # BERT-base (head_dim=64) -> 2 heads per group, grid=(B, 6) -> keeps both v7x TCs busy at B<=2
    # and bounds per-step VMEM / vreg pressure.  Falls back to one packed block per batch.
    hpg = None
    for cand in range(1, num_heads + 1):
        if num_heads % cand == 0 and (cand * head_dim) % 128 == 0:
            hpg = cand
            break

    if hpg is not None:
        gw = hpg * head_dim
        ng = num_heads // hpg
        kernel = functools.partial(_attn_kernel_grouped, heads=hpg, head_dim=head_dim)
        return pl.pallas_call(
            kernel,
            out_shape=jax.ShapeDtypeStruct((batch * seq, H), jnp.bfloat16),
            grid=(batch, ng),
            in_specs=[
                pl.BlockSpec((seq, gw), lambda b, g: (b, g)),                   # Q cols
                pl.BlockSpec((seq, gw), lambda b, g, ng=ng: (b, ng + g)),       # K cols
                pl.BlockSpec((seq, gw), lambda b, g, ng=ng: (b, 2 * ng + g)),   # V cols
                pl.BlockSpec((1, 1, seq), lambda b, g: (b, 0, 0)),
            ],
            out_specs=pl.BlockSpec((seq, gw), lambda b, g: (b, g)),
            compiler_params=pltpu.CompilerParams(
                dimension_semantics=("parallel", "parallel"),
                vmem_limit_bytes=_VMEM_LIMIT),
            cost_estimate=ce,
        )(qkv, qkv, qkv, mask_bias)

    kernel = functools.partial(_attn_kernel_packed, heads=num_heads, head_dim=head_dim, hidden=H)
    return pl.pallas_call(
        kernel,
        out_shape=jax.ShapeDtypeStruct((batch * seq, H), jnp.bfloat16),
        grid=(batch,),
        in_specs=[
            pl.BlockSpec((seq, 3 * H), lambda b: (b, 0)),
            pl.BlockSpec((1, 1, seq), lambda b: (b, 0, 0)),
        ],
        out_specs=pl.BlockSpec((seq, H), lambda b: (b, 0)),
        compiler_params=pltpu.CompilerParams(
            dimension_semantics=("parallel",),
            vmem_limit_bytes=_VMEM_LIMIT),
        cost_estimate=ce,
    )(qkv, mask_bias)


# ----------------------------------------------------------------------------
# Model (parameters + forward)
# ----------------------------------------------------------------------------

def init_params(key, cfg):
    H, I, C, NH = cfg["hidden"], cfg["intermediate"], cfg["num_classes"], cfg["heads"]
    DH = H // NH
    std = 0.02
    keys = iter(jax.random.split(key, 128))

    def nrm(shape, dtype=jnp.float32):
        return (jax.random.normal(next(keys), shape, jnp.float32) * std).astype(dtype)

    params = {
        # embeddings stored bf16 (inference): halves gather + LN input traffic
        "word_emb": nrm((cfg["vocab"], H), jnp.bfloat16),
        "pos_emb": nrm((cfg["max_pos"], H), jnp.bfloat16),
        "type_emb": nrm((2, H), jnp.bfloat16),
        "emb_ln_g": jnp.ones((H,), jnp.float32),
        "emb_ln_b": jnp.zeros((H,), jnp.float32),
        "layers": [],
        "pooler_w": nrm((H, H)),
        "pooler_b": jnp.zeros((H,), jnp.float32),
        "cls_w": nrm((H, C)),
        "cls_b": jnp.zeros((C,), jnp.float32),
    }
    wt = jnp.bfloat16           # matmul weights stored bf16 (half HBM traffic, full MXU rate)
    scale = 1.0 / math.sqrt(DH)
    for _ in range(cfg["layers"]):
        # Fold 1/sqrt(head_dim) into the Q columns of the fused QKV projection at prep time
        # (for a loaded checkpoint this is a one-time parameter transform).
        qkv_w = nrm((H, 3 * H), jnp.float32)
        qkv_w = qkv_w.at[:, :H].multiply(scale)
        qkv_b = jnp.zeros((3 * H,), jnp.float32)
        qkv_b = qkv_b.at[:H].multiply(scale)
        params["layers"].append({
            "qkv_w": qkv_w.astype(wt), "qkv_b": qkv_b,
            "o_w": nrm((H, H), wt), "o_b": jnp.zeros((H,), jnp.float32),
            "ln1_g": jnp.ones((H,), jnp.float32), "ln1_b": jnp.zeros((H,), jnp.float32),
            "i_w": nrm((H, I), wt), "i_b": jnp.zeros((I,), jnp.float32),
            "o2_w": nrm((I, H), wt), "o2_b": jnp.zeros((H,), jnp.float32),
            "ln2_g": jnp.ones((H,), jnp.float32), "ln2_b": jnp.zeros((H,), jnp.float32),
        })
    return params


def encoder_layer(h, mask_bias, p, cfg, B, S):
    H, NH = cfg["hidden"], cfg["heads"]
    DH = H // NH

    # fused QKV projection: one (H, 3H) weight-resident matmul (scale already folded into Q)
    qkv = dense(h, p["qkv_w"], p["qkv_b"])                                 # (B*S, 3H) bf16
    ctx = attention(qkv, mask_bias, batch=B, seq=S, num_heads=NH, head_dim=DH)

    # attention-output projection with residual-add + LayerNorm fused in the epilogue
    # (+ dropout: identity in eval)
    h = dense(ctx, p["o_w"], p["o_b"], residual=h,
              ln_gamma=p["ln1_g"], ln_beta=p["ln1_b"])

    # feed-forward: bias + GELU fused into FFN-up; residual + LN fused into FFN-down
    ff = dense(h, p["i_w"], p["i_b"], activation="gelu")
    h = dense(ff, p["o2_w"], p["o2_b"], residual=h,
              ln_gamma=p["ln2_g"], ln_beta=p["ln2_b"])
    return h


def bert_sentiment_forward(params, input_ids, attention_mask, cfg):
    B, S = input_ids.shape
    H = cfg["hidden"]

    # --- embeddings (gather is plain-JAX glue; LayerNorm runs in Pallas).  Summed in bf16. ---
    we = jnp.take(params["word_emb"], input_ids, axis=0)                   # (B, S, H) bf16
    pe = params["pos_emb"][:S][None, :, :]
    te = params["type_emb"][0][None, None, :]                              # token_type_ids = 0
    emb = (we + pe + te).reshape(B * S, H)                                 # bf16
    h = layernorm(emb, params["emb_ln_g"], params["emb_ln_b"])
    # (embedding dropout: identity in eval)

    # additive attention-mask bias: 0 to keep, -1e4 for masked (f32)
    mask_bias = ((1.0 - attention_mask.astype(jnp.float32)) * -10000.0).reshape(B, 1, S)

    for layer_params in params["layers"]:
        h = encoder_layer(h, mask_bias, layer_params, cfg, B, S)

    # --- pooler + classifier head in plain JAX (tiny matmuls, 2-lane-wide output) ---
    cls_tok = h.reshape(B, S, H)[:, 0, :].astype(jnp.float32)              # (B, H)
    pooled = jnp.tanh(cls_tok @ params["pooler_w"] + params["pooler_b"])
    # (classifier dropout: identity in eval)
    logits = pooled @ params["cls_w"] + params["cls_b"]                    # (B, num_classes)
    return logits


# ----------------------------------------------------------------------------
# Main
# ----------------------------------------------------------------------------

if __name__ == "__main__":
    cfg = dict(vocab=50, hidden=32, heads=2, layers=2,
               intermediate=64, max_pos=16, num_classes=2)
    B, S = 2, 8

    root = jax.random.PRNGKey(0)
    k_params, k_ids = jax.random.split(root)

    params = init_params(k_params, cfg)
    input_ids = jax.random.randint(k_ids, (B, S), 0, cfg["vocab"], dtype=jnp.int32)
    attention_mask = jnp.ones((B, S), dtype=jnp.int32)

    logits = bert_sentiment_forward(params, input_ids, attention_mask, cfg)
    jax.block_until_ready(logits)
    assert logits.shape == (B, cfg["num_classes"])
    assert bool(jnp.all(jnp.isfinite(logits)))
    print("KERNEL_OK")
</pallas_src>

<mosaic_0001>
module attributes {stable_mosaic.version = 11 : i64} {
  func.func @_ln_kernel(%arg0: i32, %arg1: memref<16x32xbf16, #tpu.memory_space<vmem>>, %arg2: memref<1x32xf32, #tpu.memory_space<vmem>>, %arg3: memref<1x32xf32, #tpu.memory_space<vmem>>, %arg4: memref<16x32xbf16, #tpu.memory_space<vmem>>) attributes {dimension_semantics = [#tpu.dimension_semantics<parallel>], iteration_bounds = array<i64: 1>, scalar_prefetch = 0 : i64, scratch_operands = 0 : i64, tpu.core_type = #tpu.core_type<tc>, window_params = [{transform_indices = @transform_0, window_bounds = array<i64: 16, 32>}, {pipeline_mode = #tpu.pipeline_mode<synchronous>, transform_indices = @transform_1, window_bounds = array<i64: 1, 32>}, {pipeline_mode = #tpu.pipeline_mode<synchronous>, transform_indices = @transform_2, window_bounds = array<i64: 1, 32>}, {transform_indices = @transform_3, window_bounds = array<i64: 16, 32>}]} {
    %c0 = arith.constant 0 : index
    %c0_0 = arith.constant 0 : index
    %0 = vector.load %arg1[%c0, %c0_0] : memref<16x32xbf16, #tpu.memory_space<vmem>>, vector<16x32xbf16>
    %1 = arith.extf %0 : vector<16x32xbf16> to vector<16x32xf32>
    %cst = arith.constant dense<0.000000e+00> : vector<16xf32>
    %2 = vector.multi_reduction <add>, %1, %cst [1] : vector<16x32xf32> to vector<16xf32>
    %3 = vector.shape_cast %2 : vector<16xf32> to vector<16x1xf32>
    %cst_1 = arith.constant 3.200000e+01 : f32
    %4 = vector.broadcast %cst_1 : f32 to vector<16x1xf32>
    %5 = arith.divf %3, %4 : vector<16x1xf32>
    %6 = vector.broadcast %5 : vector<16x1xf32> to vector<16x32xf32>
    %7 = arith.subf %1, %6 : vector<16x32xf32>
    %8 = arith.mulf %7, %7 : vector<16x32xf32>
    %cst_2 = arith.constant dense<0.000000e+00> : vector<16xf32>
    %9 = vector.multi_reduction <add>, %8, %cst_2 [1] : vector<16x32xf32> to vector<16xf32>
    %10 = vector.shape_cast %9 : vector<16xf32> to vector<16x1xf32>
    %cst_3 = arith.constant 3.200000e+01 : f32
    %11 = vector.broadcast %cst_3 : f32 to vector<16x1xf32>
    %12 = arith.divf %10, %11 : vector<16x1xf32>
    %cst_4 = arith.constant 9.99999996E-13 : f32
    %13 = vector.broadcast %cst_4 : f32 to vector<16x1xf32>
    %14 = arith.addf %12, %13 : vector<16x1xf32>
    %15 = math.rsqrt %14 : vector<16x1xf32>
    %16 = vector.broadcast %5 : vector<16x1xf32> to vector<16x32xf32>
    %17 = arith.subf %1, %16 : vector<16x32xf32>
    %18 = vector.broadcast %15 : vector<16x1xf32> to vector<16x32xf32>
    %19 = arith.mulf %17, %18 : vector<16x32xf32>
    %c0_5 = arith.constant 0 : index
    %c0_6 = arith.constant 0 : index
    %20 = vector.load %arg2[%c0_5, %c0_6] : memref<1x32xf32, #tpu.memory_space<vmem>>, vector<1x32xf32>
    %21 = vector.broadcast %20 : vector<1x32xf32> to vector<16x32xf32>
    %22 = arith.mulf %19, %21 : vector<16x32xf32>
    %c0_7 = arith.constant 0 : index
    %c0_8 = arith.constant 0 : index
    %23 = vector.load %arg3[%c0_7, %c0_8] : memref<1x32xf32, #tpu.memory_space<vmem>>, vector<1x32xf32>
    %24 = vector.broadcast %23 : vector<1x32xf32> to vector<16x32xf32>
    %25 = arith.addf %22, %24 : vector<16x32xf32>
    %26 = arith.truncf %25 : vector<16x32xf32> to vector<16x32xbf16>
    %c0_9 = arith.constant 0 : index
    %c0_10 = arith.constant 0 : index
    %27 = vector.load %arg4[%c0_9, %c0_10] : memref<16x32xbf16, #tpu.memory_space<vmem>>, vector<16x32xbf16>
    tpu.vector_store %arg4[%c0_9, %c0_10], %26 {strides = array<i32>} : memref<16x32xbf16, #tpu.memory_space<vmem>>, vector<16x32xbf16>,
    return
  }
  func.func @transform_0(%arg0: i32) -> (i32, i32) {
    %c0_i32 = arith.constant 0 : i32
    %c0_i32_0 = arith.constant 0 : i32
    return %arg0, %c0_i32 : i32, i32
  }
  func.func @transform_1(%arg0: i32) -> (i32, i32) {
    %c0_i32 = arith.constant 0 : i32
    %c0_i32_0 = arith.constant 0 : i32
    %c0_i32_1 = arith.constant 0 : i32
    return %c0_i32, %c0_i32_0 : i32, i32
  }
  func.func @transform_2(%arg0: i32) -> (i32, i32) {
    %c0_i32 = arith.constant 0 : i32
    %c0_i32_0 = arith.constant 0 : i32
    %c0_i32_1 = arith.constant 0 : i32
    return %c0_i32, %c0_i32_0 : i32, i32
  }
  func.func @transform_3(%arg0: i32) -> (i32, i32) {
    %c0_i32 = arith.constant 0 : i32
    %c0_i32_0 = arith.constant 0 : i32
    return %arg0, %c0_i32 : i32, i32
  }
}

</mosaic_0001>

<llo_original>
// kernel: tpu_custom_call.1
$region0: #{tpu_custom_call.1}
  #allocation0 [shape = 'u32[]', space=smem, size = 0x4, offset = 0x4, fixed_abs, tag = 'smem constant byte address 0x4 - core index']
  #allocation1 [shape = 'u32[144,128]{1,0:T(1,128)}', space=vmem, size = 0x12000, scoped, tag = 'internal scratch']
  %s0 = inlined_call_operand.hbm [shape: bf16[16,32], index: 0, kind: input, shape index: {}]
  %s1 = inlined_call_operand.vmem [shape: f32[1,32], index: 1, kind: input, shape index: {}]
  %s2 = inlined_call_operand.vmem [shape: f32[1,32], index: 2, kind: input, shape index: {}]
  %s3 = inlined_call_operand.hbm [shape: bf16[16,32], index: 3, kind: output, shape index: {}]
  %s4 = sld [smem:[#allocation0]]
  $region26: #{tpu_custom_call.1} parent=0
    _
  %s6 = ssub.s32 1, %s4
  %s7 = scalar_select 0, %s6, %s4
  $region1: #{tpu_custom_call.1} parent=0
    #allocation2 [shape = 'u8[4096]{0}', space=vmem, size = 0x1000, scoped, tag = 'input window, operand 0, single buffered']
    #allocation3 [shape = 's32[1]{0}', space=sflag, size = 0x4, scoped, tag = 'scoped memory for tpu_custom_call.1']
    #allocation4 [shape = 's32[1]{0}', space=sflag, size = 0x4, scoped, tag = 'scoped memory for tpu_custom_call.1']
    #allocation5 [shape = 'u8[4096]{0}', space=vmem, size = 0x1000, scoped, tag = 'output window, operand 0, single buffered']
    %8 = vsyncpa [#allocation3], 0
    %9 = vsyncpa [#allocation4], 0
    // Predicated region
    $region2: #{tpu_custom_call.1} parent=1 // pred_check
      _
    $region3: #{tpu_custom_call.1} parent=1 // pred_check_branch
      %11 = sbr.rel (0) target = $region5
    $region4: #{tpu_custom_call.1} parent=1 // pred_region
      %s13 = ssub.s32 128, 128
      %14 = vsyncadd [#allocation3], %s13
      %s15 = sshll.u32 [#allocation2], 4
      %s16 = int_to_ptr.vmem [resolvable:$true] %s15
      %21 = dma.hbm_to_vmem [thread:$0]  %s0, 128, %s16, [#allocation3], 64, 64, 4
    $region5: #{tpu_custom_call.1} parent=1 // pred_fallthru
      _
    // Predicated region
    $region6: #{tpu_custom_call.1} parent=1 // pred_check
      _
    $region7: #{tpu_custom_call.1} parent=1 // pred_check_branch
      %23 = sbr.rel (0) target = $region9
    $region8: #{tpu_custom_call.1} parent=1 // pred_region
      _
    $region9: #{tpu_custom_call.1} parent=1 // pred_fallthru
      _
    // Predicated region
    $region10: #{tpu_custom_call.1} parent=1 // pred_check
      _
    $region11: #{tpu_custom_call.1} parent=1 // pred_check_branch
      %25 = sbr.rel (0) target = $region13
    $region12: #{tpu_custom_call.1} parent=1 // pred_region
      _
    $region13: #{tpu_custom_call.1} parent=1 // pred_fallthru
      _
    // Predicated region
    $region14: #{tpu_custom_call.1} parent=1 // pred_check
      _
    $region15: #{tpu_custom_call.1} parent=1 // pred_check_branch
      %27 = sbr.rel (0) target = $region17
    $region16: #{tpu_custom_call.1} parent=1 // pred_region
      %28 = dma.done [#allocation3], 128
    $region17: #{tpu_custom_call.1} parent=1 // pred_fallthru
      _
    %v29 = vld [vmem:[#allocation2] sm:$0xf]
    %v30 = vld [vmem:[#allocation2 + $0x4] sm:$0xf]
    %v31 = vunpack.c.l.bf16 %v29
    %v32 = vunpack.c.l.bf16 %v30
    %vm33 = vcmask 261120
    %v34 = vsel %vm33, %v31, 0.0
    %35 = vadd.xlane.f32.xlu0 %v34
    %v36 = vpop.xlane.xlu0 %35
    %v37 = vsel %vm33, %v32, 0.0
    %38 = vadd.xlane.f32.xlu0 %v37
    %v39 = vpop.xlane.xlu0 %38
    %v40 = vrcp.pop 32.0
    %v41 = vmul.f32 %v36, %v40
    %v42 = vmul.f32 %v39, %v40
    %v43 = vsub.f32 %v31, %v41
    %v44 = vsub.f32 %v32, %v42
    %v45 = vmul.f32 %v43, %v43
    %v46 = vmul.f32 %v44, %v44
    %v47 = vsel %vm33, %v45, 0.0
    %48 = vadd.xlane.f32.xlu0 %v47
    %v49 = vpop.xlane.xlu0 %48
    %v50 = vsel %vm33, %v46, 0.0
    %51 = vadd.xlane.f32.xlu0 %v50
    %v52 = vpop.xlane.xlu0 %51
    %v53 = vmul.f32 %v49, %v40
    %v54 = vmul.f32 %v52, %v40
    %v55 = vadd.f32 %v53, 1e-12
    %v56 = vadd.f32 %v54, 1e-12
    %v57 = vrsqrt.pop %v55
    %v58 = vrsqrt.pop %v56
    %v59 = vmul.f32 %v43, %v57
    %v60 = vmul.f32 %v44, %v58
    %v61 = vld [vmem:[%s1] sm:$0x1]
    %v63 = vlaneseq
    %v64 = vshrl.u32 %v63, 7
    %v65 = vsub.s32 0, %v64
    %v66 = vrot.slane %v61, %v65
    %v68 = vmul.f32 %v59, %v66
    %v69 = vmul.f32 %v60, %v66
    %v70 = vld [vmem:[%s2] sm:$0x1]
    %v72 = vlaneseq
    %v73 = vshrl.u32 %v72, 7
    %v74 = vsub.s32 0, %v73
    %v75 = vrot.slane %v70, %v74
    %v77 = vadd.f32 %v68, %v75
    %v78 = vadd.f32 %v69, %v75
    %v79 = vpack.c.bf16 %v78, %v77
    %v81 = vunpack.c.l.b16 %v79
    %v82 = vunpack.c.h.b16 %v79
    %v83 = vpack.c.b16 %v81, %v81
    %v84 = vpack.c.b16 %v82, %v82
    %vm87 = vcmask 257024
    %88 = vst.msk [vmem:[#allocation5] sm:$0xf] %vm87, %v83
    %89 = vst.msk [vmem:[#allocation5 + $0x4] sm:$0xf] %vm87, %v84
    // Predicated region
    $region18: #{tpu_custom_call.1} parent=1 // pred_check
      _
    $region19: #{tpu_custom_call.1} parent=1 // pred_check_branch
      %91 = sbr.rel (0) target = $region21
    $region20: #{tpu_custom_call.1} parent=1 // pred_region
      %s93 = ssub.s32 128, 128
      %94 = vsyncadd [#allocation4], %s93
      %s95 = sshll.u32 [#allocation5], 4
      %s96 = int_to_ptr.vmem [resolvable:$true] %s95
      %101 = dma.vmem_to_hbm [thread:$0]  %s96, 128, %s3, [#allocation4], 64, 64, 4
    $region21: #{tpu_custom_call.1} parent=1 // pred_fallthru
      _
    // Predicated region
    $region22: #{tpu_custom_call.1} parent=1 // pred_check
      _
    $region23: #{tpu_custom_call.1} parent=1 // pred_check_branch
      %103 = sbr.rel (0) target = $region25
    $region24: #{tpu_custom_call.1} parent=1 // pred_region
      %104 = dma.done [#allocation4], 128
    $region25: #{tpu_custom_call.1} parent=1 // pred_fallthru
      _
    %105 = vsyncpa [#allocation3], 1
    %106 = vsyncpa [#allocation4], 1

</llo_original>
